<compile_context>
chip_gen: v5e
topology: v5e:2x2
jax: 0.10.0
libtpu: 0.0.40
codegen_flags: <defaults>
</compile_context>

<pallas_src>
import functools

import jax
import jax.numpy as jnp
from jax import lax
from jax.experimental import pallas as pl
from jax.experimental.pallas import tpu as pltpu


def _embedding_kernel(x_ref, wT_ref, b_ref, out_ref, *, emb_layers):
    """x_ref:   (1, tile_t, F)  f32   input rows (time on sublanes, channels minor)
    wT_ref:  (L, F, F)        bf16  BN-folded conv weights, transposed (out, in)
    b_ref:   (L, F, 1)        f32   BN-folded biases (per out channel)
    out_ref: (1, F, tile_t)         NCHW-ordered output block (lane-dense)
    """
    x = x_ref[0].astype(jnp.float32)                      # (tile_t, F) raw input
    x_bf16 = x.astype(jnp.bfloat16)

    # Layer 0 straight from the row-major tile: contract the F (last) dim of
    # both operands -> (F_out, tile_t).  No explicit transpose of x on the MXU.
    contract_last = (((1,), (1,)), ((), ()))
    h = lax.dot_general(wT_ref[0], x_bf16, contract_last,
                        preferred_element_type=jnp.float32)
    out = jnp.maximum(h + b_ref[0], 0.0)                  # folded BN bias + ReLU

    for i in range(1, emb_layers):                        # static unroll, L small
        h = jnp.dot(wT_ref[i], out.astype(jnp.bfloat16),
                    preferred_element_type=jnp.float32)   # 1x1 conv == matmul
        out = jnp.maximum(h + b_ref[i], 0.0)
    # TODO(synk): training-mode dropout (pltpu.prng_*) not implemented;
    # eval mode => identity.

    # Residual = raw (un-normalized) x, exactly f32, transposed on the XLU
    # (free slot) rather than via an identity matmul on the MXU.
    out_ref[0] = (out + jnp.transpose(x)).astype(out_ref.dtype)


def _round_up(x, m):
    return pl.cdiv(x, m) * m


def embedding_layers_forward(x_ntf, w_stack, bn0_sb, bn_sb, *,
                             max_tile_t=4096, out_dtype=None):
    """x_ntf:   (N, T, freq_bins) f32  -- the module's `input`
    w_stack: (L, in, out) f32 conv1x1 weights (PyTorch weight[:, :, 0, 0].T)
    bn0_sb:  (2, F)    eval-mode BN0 (scale, shift)
    bn_sb:   (L, 2, F) eval-mode BN_{1..L} (scale, shift)
    out_dtype: None -> x dtype (matches PyTorch); jnp.bfloat16 halves HBM writes.
    returns  (N, hidden_units, T, 1) -- PyTorch NCHW output.
    """
    N, T, F = x_ntf.shape
    L, c_in, c_out = w_stack.shape
    assert L >= 1
    assert c_in == F and c_out == F, "residual add requires hidden_units == freq_bins"

    # ---- host/XLA-side one-time BN folding + bf16 weight cast ----
    s0, t0 = bn0_sb[0], bn0_sb[1]
    s, t = bn_sb[:, 0, :], bn_sb[:, 1, :]                 # (L, F) each
    wT = jnp.swapaxes(w_stack, 1, 2) * s[:, :, None]      # (L, out, in) * s_{i+1}
    wT = wT.at[0].multiply(s0[None, :])                   # BN0 scale into layer 0
    bias = t.at[0].add((t0 @ w_stack[0]) * s[0])          # BN0 shift through layer 0
    wT_bf16 = wT.astype(jnp.bfloat16)
    bias_col = bias[:, :, None].astype(jnp.float32)       # (L, F, 1)

    out_dtype = x_ntf.dtype if out_dtype is None else out_dtype

    # ---- lane-dense time tiling; partial last tile handled by Pallas, so no
    # materialized jnp.pad of x and no output slice afterwards ----
    max_tile_t = max(128, (max_tile_t // 128) * 128)
    tile_t = min(max_tile_t, _round_up(T, 128))
    grid = (N, pl.cdiv(T, tile_t))

    out_nft = pl.pallas_call(
        functools.partial(_embedding_kernel, emb_layers=L),
        out_shape=jax.ShapeDtypeStruct((N, F, T), out_dtype),
        grid=grid,
        in_specs=[
            pl.BlockSpec((1, tile_t, F), lambda n, tb: (n, tb, 0)),   # x rows
            pl.BlockSpec((L, F, F), lambda n, tb: (0, 0, 0)),         # folded weights
            pl.BlockSpec((L, F, 1), lambda n, tb: (0, 0, 0)),         # folded biases
        ],
        out_specs=pl.BlockSpec((1, F, tile_t), lambda n, tb: (n, 0, tb)),
        compiler_params=pltpu.CompilerParams(
            dimension_semantics=("parallel", "parallel")),
    )(x_ntf, wT_bf16, bias_col)

    return out_nft[..., None]                             # (N, hidden, T, 1)


def ref_forward(x_ntf, w_stack, bn0_sb, bn_sb):
    """Plain-JAX f32 reference of the module's eval-mode forward."""
    N, T, F = x_ntf.shape
    x = x_ntf.reshape(N * T, F).astype(jnp.float32)
    out = x * bn0_sb[0] + bn0_sb[1]
    for i in range(w_stack.shape[0]):
        out = jnp.maximum((out @ w_stack[i]) * bn_sb[i, 0] + bn_sb[i, 1], 0.0)
    out = out + x
    return out.reshape(N, T, F).transpose(0, 2, 1)[..., None]


if __name__ == "__main__":
    # Shapes consistent with forward(): input (samples_num, time_steps, freq_bins).
    N, T = 2, 256
    freq_bins = hidden_units = 32     # residual add in forward() forces these equal
    emb_layers = 2
    drop_rate = 0.1                   # unused (eval mode)
    eps = 1e-5                        # PyTorch BatchNorm2d default

    key = jax.random.PRNGKey(0)
    kx, kw, kbn = jax.random.split(key, 3)
    x = jax.random.normal(kx, (N, T, freq_bins), dtype=jnp.float32)

    # Conv2d weights: PyTorch shape (out_ch, in_ch, 1, 1), bias=False.
    # Stored here transposed as (in_ch, out_ch), Xavier-ish scale.
    w_keys = jax.random.split(kw, emb_layers)
    w_stack = jnp.stack([
        jax.random.normal(w_keys[i], (freq_bins, hidden_units), jnp.float32)
        * (1.0 / jnp.sqrt(freq_bins))
        for i in range(emb_layers)
    ])

    # BatchNorm2d (gamma, beta, running_mean, running_var) folded to scale/shift.
    bn_keys = jax.random.split(kbn, emb_layers + 1)

    def make_bn(k, c):
        kg, kb, km, kv = jax.random.split(k, 4)
        gamma = 1.0 + 0.1 * jax.random.normal(kg, (c,), jnp.float32)
        beta = 0.1 * jax.random.normal(kb, (c,), jnp.float32)
        mean = 0.1 * jax.random.normal(km, (c,), jnp.float32)
        var = 1.0 + 0.1 * jax.random.uniform(kv, (c,), jnp.float32)
        scale = gamma / jnp.sqrt(var + eps)
        shift = beta - mean * scale
        return jnp.stack([scale, shift])          # (2, c)

    bn0_sb = make_bn(bn_keys[0], freq_bins)
    bn_sb = jnp.stack([make_bn(bn_keys[i + 1], hidden_units) for i in range(emb_layers)])

    out = embedding_layers_forward(x, w_stack, bn0_sb, bn_sb)
    out = jax.block_until_ready(out)

    ref = ref_forward(x, w_stack, bn0_sb, bn_sb)
    assert out.shape == (N, hidden_units, T, 1), out.shape
    # Kernel uses bf16 matmul operands (single-pass MXU); compare against the
    # exact-f32 reference at a quantization-aware tolerance.  The residual path
    # is exact f32 (XLU transpose, no MXU truncation).
    assert jnp.allclose(out, ref, atol=5e-2, rtol=5e-2), "mismatch vs reference"
    print("KERNEL_OK")
</pallas_src>

<mosaic_0001>
module attributes {stable_mosaic.version = 11 : i64} {
  func.func @_embedding_kernel(%arg0: i32, %arg1: i32, %arg2: memref<1x256x32xf32, #tpu.memory_space<vmem>>, %arg3: memref<2x32x32xbf16, #tpu.memory_space<vmem>>, %arg4: memref<2x32x1xf32, #tpu.memory_space<vmem>>, %arg5: memref<1x32x256xf32, #tpu.memory_space<vmem>>) attributes {dimension_semantics = [#tpu.dimension_semantics<parallel>, #tpu.dimension_semantics<parallel>], iteration_bounds = array<i64: 2, 1>, scalar_prefetch = 0 : i64, scratch_operands = 0 : i64, tpu.core_type = #tpu.core_type<tc>, window_params = [{transform_indices = @transform_0, window_bounds = array<i64: 1, 256, 32>}, {pipeline_mode = #tpu.pipeline_mode<synchronous>, transform_indices = @transform_1, window_bounds = array<i64: 2, 32, 32>}, {pipeline_mode = #tpu.pipeline_mode<synchronous>, transform_indices = @transform_2, window_bounds = array<i64: 2, 32, 1>}, {transform_indices = @transform_3, window_bounds = array<i64: 1, 32, 256>}]} {
    %c0 = arith.constant 0 : index
    %c0_0 = arith.constant 0 : index
    %c0_1 = arith.constant 0 : index
    %0 = vector.load %arg2[%c0, %c0_0, %c0_1] : memref<1x256x32xf32, #tpu.memory_space<vmem>>, vector<1x256x32xf32>
    %1 = vector.shape_cast %0 : vector<1x256x32xf32> to vector<256x32xf32>
    %2 = arith.truncf %1 : vector<256x32xf32> to vector<256x32xbf16>
    %c0_2 = arith.constant 0 : index
    %c0_3 = arith.constant 0 : index
    %c0_4 = arith.constant 0 : index
    %3 = vector.load %arg3[%c0_2, %c0_3, %c0_4] : memref<2x32x32xbf16, #tpu.memory_space<vmem>>, vector<1x32x32xbf16>
    %4 = vector.shape_cast %3 : vector<1x32x32xbf16> to vector<32x32xbf16>
    %cst = arith.constant dense<0.000000e+00> : vector<32x256xf32>
    %5 = tpu.matmul %4, %2, %cst {dimension_numbers = #tpu.dot_dimension_numbers<[1], [1], [0], [0], [0, 0, 1, 0], [], []>} : vector<32x32xbf16>, vector<256x32xbf16>, vector<32x256xf32> -> vector<32x256xf32>
    %c0_5 = arith.constant 0 : index
    %c0_6 = arith.constant 0 : index
    %c0_7 = arith.constant 0 : index
    %6 = vector.load %arg4[%c0_5, %c0_6, %c0_7] : memref<2x32x1xf32, #tpu.memory_space<vmem>>, vector<1x32x1xf32>
    %7 = vector.shape_cast %6 : vector<1x32x1xf32> to vector<32x1xf32>
    %8 = vector.broadcast %7 : vector<32x1xf32> to vector<32x256xf32>
    %9 = arith.addf %5, %8 : vector<32x256xf32>
    %cst_8 = arith.constant 0.000000e+00 : f32
    %10 = vector.broadcast %cst_8 : f32 to vector<32x256xf32>
    %11 = arith.maximumf %9, %10 : vector<32x256xf32>
    %c1 = arith.constant 1 : index
    %c0_9 = arith.constant 0 : index
    %c0_10 = arith.constant 0 : index
    %12 = vector.load %arg3[%c1, %c0_9, %c0_10] : memref<2x32x32xbf16, #tpu.memory_space<vmem>>, vector<1x32x32xbf16>
    %13 = vector.shape_cast %12 : vector<1x32x32xbf16> to vector<32x32xbf16>
    %14 = arith.truncf %11 : vector<32x256xf32> to vector<32x256xbf16>
    %cst_11 = arith.constant dense<0.000000e+00> : vector<32x256xf32>
    %15 = tpu.matmul %13, %14, %cst_11 {dimension_numbers = #tpu.dot_dimension_numbers<[1], [0], [0], [1], [0, 0, 1, 1], [], []>} : vector<32x32xbf16>, vector<32x256xbf16>, vector<32x256xf32> -> vector<32x256xf32>
    %c1_12 = arith.constant 1 : index
    %c0_13 = arith.constant 0 : index
    %c0_14 = arith.constant 0 : index
    %16 = vector.load %arg4[%c1_12, %c0_13, %c0_14] : memref<2x32x1xf32, #tpu.memory_space<vmem>>, vector<1x32x1xf32>
    %17 = vector.shape_cast %16 : vector<1x32x1xf32> to vector<32x1xf32>
    %18 = vector.broadcast %17 : vector<32x1xf32> to vector<32x256xf32>
    %19 = arith.addf %15, %18 : vector<32x256xf32>
    %cst_15 = arith.constant 0.000000e+00 : f32
    %20 = vector.broadcast %cst_15 : f32 to vector<32x256xf32>
    %21 = arith.maximumf %19, %20 : vector<32x256xf32>
    %22 = tpu.transpose %1, [1, 0] : vector<256x32xf32> -> vector<32x256xf32>
    %23 = arith.addf %21, %22 : vector<32x256xf32>
    %c0_16 = arith.constant 0 : index
    %c0_17 = arith.constant 0 : index
    %c0_18 = arith.constant 0 : index
    %24 = vector.load %arg5[%c0_16, %c0_17, %c0_18] : memref<1x32x256xf32, #tpu.memory_space<vmem>>, vector<1x32x256xf32>
    %25 = vector.shape_cast %24 : vector<1x32x256xf32> to vector<32x256xf32>
    %26 = vector.shape_cast %23 : vector<32x256xf32> to vector<1x32x256xf32>
    tpu.vector_store %arg5[%c0_16, %c0_17, %c0_18], %26 {strides = array<i32>} : memref<1x32x256xf32, #tpu.memory_space<vmem>>, vector<1x32x256xf32>,
    return
  }
  func.func @transform_0(%arg0: i32, %arg1: i32) -> (i32, i32, i32) {
    %c0_i32 = arith.constant 0 : i32
    %c0_i32_0 = arith.constant 0 : i32
    return %arg0, %arg1, %c0_i32 : i32, i32, i32
  }
  func.func @transform_1(%arg0: i32, %arg1: i32) -> (i32, i32, i32) {
    %c0_i32 = arith.constant 0 : i32
    %c0_i32_0 = arith.constant 0 : i32
    %c0_i32_1 = arith.constant 0 : i32
    %c0_i32_2 = arith.constant 0 : i32
    return %c0_i32, %c0_i32_0, %c0_i32_1 : i32, i32, i32
  }
  func.func @transform_2(%arg0: i32, %arg1: i32) -> (i32, i32, i32) {
    %c0_i32 = arith.constant 0 : i32
    %c0_i32_0 = arith.constant 0 : i32
    %c0_i32_1 = arith.constant 0 : i32
    %c0_i32_2 = arith.constant 0 : i32
    return %c0_i32, %c0_i32_0, %c0_i32_1 : i32, i32, i32
  }
  func.func @transform_3(%arg0: i32, %arg1: i32) -> (i32, i32, i32) {
    %c0_i32 = arith.constant 0 : i32
    %c0_i32_0 = arith.constant 0 : i32
    return %arg0, %c0_i32, %arg1 : i32, i32, i32
  }
}

</mosaic_0001>

<llo_original>
// kernel: tpu_custom_call.1
$region0: #{tpu_custom_call.1}
  #allocation0 [shape = 'u32[]', space=smem, size = 0x4, offset = 0x4, fixed_abs, tag = 'smem constant byte address 0x4 - core index']
  #allocation1 [shape = 'u32[72,128]{1,0:T(1,128)}', space=vmem, size = 0x9000, scoped, tag = 'internal scratch']
  %s0 = inlined_call_operand.vmem [shape: f32[2,256,32], index: 0, kind: input, shape index: {}]
  %s1 = inlined_call_operand.vmem [shape: bf16[2,32,32], index: 1, kind: input, shape index: {}]
  %s2 = inlined_call_operand.vmem [shape: f32[2,32,1], index: 2, kind: input, shape index: {}]
  %s3 = inlined_call_operand.hbm [shape: f32[2,32,256], index: 3, kind: output, shape index: {}]
  %s4 = sld [smem:[#allocation0]]
  $region45: #{tpu_custom_call.1} parent=0
    _
  %s6 = ssub.s32 1, %s4
  %s7 = scalar_select 0, %s6, %s4
  $region1: #{tpu_custom_call.1} parent=0
    #allocation2 [shape = 'u8[65536]{0}', space=vmem, size = 0x10000, scoped, tag = 'output window, operand 0']
    #allocation3 [shape = 's32[2]{0}', space=sflag, size = 0x8, scoped, tag = 'scoped memory for tpu_custom_call.1']
    %8 = vsyncpa [#allocation3], 0
    %s9 = scalar_lea.sflag [#allocation3], 1
    %10 = vsyncpa %s9, 0
    loop: start=0, step=1, limit=4
    $region2: #{tpu_custom_call.1} parent=1 // loop_pre_header
      _
    $region3: #{tpu_custom_call.1} parent=1 // loop_header
      %s12 = sphi 0, %s16
      %p13 = scmp.ge.s32.totalorder %s12, 4
      %s19 = sphi 0, %s31
      %s20 = sphi 0, %s27
      %s21 = sphi 0, %s19
      %s22 = sphi 0, %s20
      %s23 = sphi 0, %s21
      %s24 = sphi 0, %s22
      %s36 = sphi 0, %s38
      %s39 = sphi 0, %s36
      %s40 = sphi 0, %s39
      %s56 = sphi 0, %s40
      %s60 = sphi 0, %s60
      %s62 = sphi 0, %s60
      %s63 = sphi 0, %s62
      %s77 = sphi 0, %s63
      %s81 = sphi 0, %s81
      %s83 = sphi 0, %s81
      %s84 = sphi 0, %s83
      %s98 = sphi 0, %s84
      %s106 = sphi 0, %s108
      %s109 = sphi 0, %s106
      %s110 = sphi 0, %s109
      %s126 = sphi 0, %s110
    $region4: #{tpu_custom_call.1} parent=1 // loop_header_branch
      %15 = sbr.rel (%p13) target = $region8
    $region5: #{tpu_custom_call.1} parent=1 // loop_body
      %s17 = ssub.s32 %s12, 1
      %s18 = ssub.s32 %s12, 2
      %s25 = sadd.s32 1, %s20
      %p26 = scmp.ge.s32.totalorder %s25, 1
      %s27 = scalar_select %p26, 0, %s25
      %s28 = sadd.s32 1, %s19
      %s29 = scalar_select %p26, %s28, %s19
      %p30 = scmp.ge.s32.totalorder %s29, 2
      %s31 = scalar_select %p30, 0, %s29
      %s32 = ssub.s32 %s19, %s31
      %s33 = ssub.s32 %s20, %s27
      %s34 = sor.u32 %s32, %s33
      %p35 = scmp.eq.s32.totalorder %s34, 0
      %s37 = sadd.s32 %s36, 1
      %s38 = scalar_select %p35, %s36, %s37
      %p41 = pneg %p35
      %p42 = scmp.eq.s32.totalorder %s12, 1
      %p43 = por %p41, %p42
      %p44 = scmp.ne.s32.totalorder %s36, %s39
      %p45 = scmp.eq.s32.totalorder %s12, 0
      %p46 = por %p44, %p45
      %p47 = scmp.ne.s32.totalorder %s36, %s39
      %p48 = scmp.eq.s32.totalorder %s17, 1
      %p49 = por %p47, %p48
      %p50 = scmp.ne.s32.totalorder %s39, %s40
      %p51 = scmp.eq.s32.totalorder %s17, 0
      %p52 = por %p50, %p51
      %p53 = scmp.ne.s32.totalorder %s39, %s40
      %p54 = scmp.eq.s32.totalorder %s18, 1
      %p55 = por %p53, %p54
      %p57 = scmp.ne.s32.totalorder %s40, %s56
      %p58 = scmp.eq.s32.totalorder %s18, 0
      %p59 = por %p57, %p58
      %s61 = sadd.s32 %s60, 1
      %p64 = scmp.eq.s32.totalorder %s12, 1
      %p65 = scmp.ne.s32.totalorder %s60, %s62
      %p66 = scmp.eq.s32.totalorder %s12, 0
      %p67 = por %p65, %p66
      %p68 = scmp.ne.s32.totalorder %s60, %s62
      %p69 = scmp.eq.s32.totalorder %s17, 1
      %p70 = por %p68, %p69
      %p71 = scmp.ne.s32.totalorder %s62, %s63
      %p72 = scmp.eq.s32.totalorder %s17, 0
      %p73 = por %p71, %p72
      %p74 = scmp.ne.s32.totalorder %s62, %s63
      %p75 = scmp.eq.s32.totalorder %s18, 1
      %p76 = por %p74, %p75
      %p78 = scmp.ne.s32.totalorder %s63, %s77
      %p79 = scmp.eq.s32.totalorder %s18, 0
      %p80 = por %p78, %p79
      %s82 = sadd.s32 %s81, 1
      %p85 = scmp.eq.s32.totalorder %s12, 1
      %p86 = scmp.ne.s32.totalorder %s81, %s83
      %p87 = scmp.eq.s32.totalorder %s12, 0
      %p88 = por %p86, %p87
      %p89 = scmp.ne.s32.totalorder %s81, %s83
      %p90 = scmp.eq.s32.totalorder %s17, 1
      %p91 = por %p89, %p90
      %p92 = scmp.ne.s32.totalorder %s83, %s84
      %p93 = scmp.eq.s32.totalorder %s17, 0
      %p94 = por %p92, %p93
      %p95 = scmp.ne.s32.totalorder %s83, %s84
      %p96 = scmp.eq.s32.totalorder %s18, 1
      %p97 = por %p95, %p96
      %p99 = scmp.ne.s32.totalorder %s84, %s98
      %p100 = scmp.eq.s32.totalorder %s18, 0
      %p101 = por %p99, %p100
      %s102 = ssub.s32 %s19, %s31
      %s103 = ssub.s32 %s20, %s27
      %s104 = sor.u32 %s102, %s103
      %p105 = scmp.eq.s32.totalorder %s104, 0
      %s107 = sadd.s32 %s106, 1
      %s108 = scalar_select %p105, %s106, %s107
      %p111 = pneg %p105
      %p112 = scmp.eq.s32.totalorder %s12, 1
      %p113 = por %p111, %p112
      %p114 = scmp.ne.s32.totalorder %s106, %s109
      %p115 = scmp.eq.s32.totalorder %s12, 0
      %p116 = por %p114, %p115
      %p117 = scmp.ne.s32.totalorder %s106, %s109
      %p118 = scmp.eq.s32.totalorder %s17, 1
      %p119 = por %p117, %p118
      %p120 = scmp.ne.s32.totalorder %s109, %s110
      %p121 = scmp.eq.s32.totalorder %s17, 0
      %p122 = por %p120, %p121
      %p123 = scmp.ne.s32.totalorder %s109, %s110
      %p124 = scmp.eq.s32.totalorder %s18, 1
      %p125 = por %p123, %p124
      %p127 = scmp.ne.s32.totalorder %s110, %s126
      %p128 = scmp.eq.s32.totalorder %s18, 0
      %p129 = por %p127, %p128
      %p130 = scmp.le.s32.totalorder 1, %s12
      %p131 = scmp.lt.s32.totalorder %s12, 3
      %p132 = pnand %p130, %p131
      %p133 = pneg %p132
      // Predicated region
      $region9: #{tpu_custom_call.1} parent=5 // pred_check
        _
      $region10: #{tpu_custom_call.1} parent=5 // pred_check_branch
        %135 = sbr.rel (%p132) target = $region12
      $region11: #{tpu_custom_call.1} parent=5 // pred_region
        %s136 = ssub.s32 %s12, 1
        // Predicated region
        $region13: #{tpu_custom_call.1} parent=11 // pred_check
          %p137 = pneg %p73
        $region14: #{tpu_custom_call.1} parent=11 // pred_check_branch
          %139 = sbr.rel (%p137) target = $region16
        $region15: #{tpu_custom_call.1} parent=11 // pred_region
          _
        $region16: #{tpu_custom_call.1} parent=11 // pred_fallthru
          _
        // Predicated region
        $region17: #{tpu_custom_call.1} parent=11 // pred_check
          %p140 = pneg %p94
        $region18: #{tpu_custom_call.1} parent=11 // pred_check_branch
          %142 = sbr.rel (%p140) target = $region20
        $region19: #{tpu_custom_call.1} parent=11 // pred_region
          _
        $region20: #{tpu_custom_call.1} parent=11 // pred_fallthru
          _
      $region12: #{tpu_custom_call.1} parent=5 // pred_fallthru
        _
      %p143 = scmp.lt.s32.totalorder %s12, 2
      // Predicated region
      $region21: #{tpu_custom_call.1} parent=5 // pred_check
        %p144 = pneg %p143
      $region22: #{tpu_custom_call.1} parent=5 // pred_check_branch
        %146 = sbr.rel (%p144) target = $region24
      $region23: #{tpu_custom_call.1} parent=5 // pred_region
        // Predicated region
        $region25: #{tpu_custom_call.1} parent=23 // pred_check
          %p147 = pneg %p46
        $region26: #{tpu_custom_call.1} parent=23 // pred_check_branch
          %149 = sbr.rel (%p147) target = $region28
        $region27: #{tpu_custom_call.1} parent=23 // pred_region
          %s150 = smul.u32 32, %s20
          %p151 = scmp.lt.s32.totalorder %s19, 1
          %s152 = scalar_select %p151, %s19, 1
          %p153 = scmp.lt.s32.totalorder %s150, 31
          %s154 = scalar_select %p153, %s150, 31
          %s155 = smul.addr %s152, 32
          %s156 = sadd.s32 %s154, %s155
          %s157 = smul.addr %s156, 8
          %s158 = scalar_lea.vmem %s0, %s157
          %s159 = smul.u32 32, %s20
        $region28: #{tpu_custom_call.1} parent=23 // pred_fallthru
          _
      $region24: #{tpu_custom_call.1} parent=5 // pred_fallthru
        _
      %p160 = scmp.le.s32.totalorder 1, %s12
      %p161 = scmp.lt.s32.totalorder %s12, 3
      %p162 = pnand %p160, %p161
      %p163 = pneg %p162
      // Predicated region
      $region29: #{tpu_custom_call.1} parent=5 // pred_check
        _
      $region30: #{tpu_custom_call.1} parent=5 // pred_check_branch
        %165 = sbr.rel (%p162) target = $region32
      $region31: #{tpu_custom_call.1} parent=5 // pred_region
        %s166 = ssub.s32 %s12, 1
        %s167 = smul.u32 32, %s22
        %p168 = scmp.lt.s32.totalorder %s21, 1
        %s169 = scalar_select %p168, %s21, 1
        %p170 = scmp.lt.s32.totalorder %s167, 31
        %s171 = scalar_select %p170, %s167, 31
        %s172 = smul.addr %s169, 32
        %s173 = sadd.s32 %s171, %s172
        %s174 = smul.addr %s173, 8
        %s175 = scalar_lea.vmem %s0, %s174
        %p176 = pneg %p52
        %p177 = pneg %p49
        %p178 = pneg %p73
        %p179 = pneg %p70
        %p180 = pneg %p94
        %p181 = pneg %p91
        %p182 = pneg %p122
        %p183 = pneg %p119
        %s184 = sand.u32 %s109, 1
        %s185 = scalar_lea.sflag [#allocation3], %s184
        %s186 = sand.u32 %s109, 1
        %s187 = smul.addr %s186, 64
        %s188 = scalar_lea.vmem [#allocation2], %s187
        %s189 = smul.u32 32, %s22
        %p190 = scmp.lt.s32.totalorder %s21, 1
        %s191 = scalar_select %p190, %s21, 1
        %p192 = scmp.lt.s32.totalorder %s189, 31
        %s193 = scalar_select %p192, %s189, 31
        %s194 = smul.addr %s191, 32
        %s195 = sadd.s32 %s193, %s194
        %s196 = smul.addr %s195, 8
        %s197 = scalar_lea.vmem %s0, %s196
        %s198 = smul.u32 32, %s22
        %s199 = smul.u32 2, %s22
        %v201 = vld [vmem:[%s197] sm:$0xff]
        %v202 = vld [vmem:[%s197 + $0x8] sm:$0xff]
        %v203 = vld [vmem:[%s197 + $0x10] sm:$0xff]
        %v204 = vld [vmem:[%s197 + $0x18] sm:$0xff]
        %v205 = vld [vmem:[%s197 + $0x20] sm:$0xff]
        %v206 = vld [vmem:[%s197 + $0x28] sm:$0xff]
        %v207 = vld [vmem:[%s197 + $0x30] sm:$0xff]
        %v208 = vld [vmem:[%s197 + $0x38] sm:$0xff]
        %v209 = vld [vmem:[%s197 + $0x40] sm:$0xff]
        %v210 = vld [vmem:[%s197 + $0x48] sm:$0xff]
        %v211 = vld [vmem:[%s197 + $0x50] sm:$0xff]
        %v212 = vld [vmem:[%s197 + $0x58] sm:$0xff]
        %v213 = vld [vmem:[%s197 + $0x60] sm:$0xff]
        %v214 = vld [vmem:[%s197 + $0x68] sm:$0xff]
        %v215 = vld [vmem:[%s197 + $0x70] sm:$0xff]
        %v216 = vld [vmem:[%s197 + $0x78] sm:$0xff]
        %v217 = vld [vmem:[%s197 + $0x80] sm:$0xff]
        %v218 = vld [vmem:[%s197 + $0x88] sm:$0xff]
        %v219 = vld [vmem:[%s197 + $0x90] sm:$0xff]
        %v220 = vld [vmem:[%s197 + $0x98] sm:$0xff]
        %v221 = vld [vmem:[%s197 + $0xa0] sm:$0xff]
        %v222 = vld [vmem:[%s197 + $0xa8] sm:$0xff]
        %v223 = vld [vmem:[%s197 + $0xb0] sm:$0xff]
        %v224 = vld [vmem:[%s197 + $0xb8] sm:$0xff]
        %v225 = vld [vmem:[%s197 + $0xc0] sm:$0xff]
        %v226 = vld [vmem:[%s197 + $0xc8] sm:$0xff]
        %v227 = vld [vmem:[%s197 + $0xd0] sm:$0xff]
        %v228 = vld [vmem:[%s197 + $0xd8] sm:$0xff]
        %v229 = vld [vmem:[%s197 + $0xe0] sm:$0xff]
        %v230 = vld [vmem:[%s197 + $0xe8] sm:$0xff]
        %v231 = vld [vmem:[%s197 + $0xf0] sm:$0xff]
        %v232 = vld [vmem:[%s197 + $0xf8] sm:$0xff]
        %v233 = vpack.c.bf16 %v202, %v201
        %v234 = vpack.c.bf16 %v204, %v203
        %v235 = vpack.c.bf16 %v206, %v205
        %v236 = vpack.c.bf16 %v208, %v207
        %v237 = vpack.c.bf16 %v210, %v209
        %v238 = vpack.c.bf16 %v212, %v211
        %v239 = vpack.c.bf16 %v214, %v213
        %v240 = vpack.c.bf16 %v216, %v215
        %v241 = vpack.c.bf16 %v218, %v217
        %v242 = vpack.c.bf16 %v220, %v219
        %v243 = vpack.c.bf16 %v222, %v221
        %v244 = vpack.c.bf16 %v224, %v223
        %v245 = vpack.c.bf16 %v226, %v225
        %v246 = vpack.c.bf16 %v228, %v227
        %v247 = vpack.c.bf16 %v230, %v229
        %v248 = vpack.c.bf16 %v232, %v231
        %v249 = vld [vmem:[%s1] sm:$0xf]
        %v250 = vld [vmem:[%s1 + $0x4] sm:$0xf]
        %v251 = vld [vmem:[%s1 + $0x8] sm:$0xf]
        %v252 = vld [vmem:[%s1 + $0xc] sm:$0xf]
        %v253 = vld [vmem:[%s2] sm:$0xff]
        %v254 = vld [vmem:[%s2 + $0x8] sm:$0xff]
        %v255 = vld [vmem:[%s2 + $0x10] sm:$0xff]
        %v256 = vld [vmem:[%s2 + $0x18] sm:$0xff]
        %258 = vset.pattern.permute.xlu0 0
        %259 = vperm.xlu0 %258, %v253
        %v260 = vpop.permute.xlu0 %259
        %263 = vset.pattern.permute.xlu0 0
        %264 = vperm.xlu0 %263, %v254
        %v265 = vpop.permute.xlu0 %264
        %268 = vset.pattern.permute.xlu0 0
        %269 = vperm.xlu0 %268, %v255
        %v270 = vpop.permute.xlu0 %269
        %273 = vset.pattern.permute.xlu0 0
        %274 = vperm.xlu0 %273, %v256
        %v275 = vpop.permute.xlu0 %274
        %v281 = vunpack.c.l.b16 %v249
        %v282 = vunpack.c.l.b16 %v250
        %v283 = vunpack.c.l.b16 %v251
        %v284 = vunpack.c.l.b16 %v252
        %v285 = vpack.c.b16 %v282, %v281
        %v286 = vpack.c.b16 %v284, %v283
        %vm287 = vcmask 261120
        %v289 = vsel %vm287, %v285, 0
        %v292 = vsel %vm287, %v286, 0
        %v295 = vsel %vm287, %v233, 0
        %v298 = vsel %vm287, %v234, 0
        %v301 = vsel %vm287, %v235, 0
        %v304 = vsel %vm287, %v236, 0
        %v307 = vsel %vm287, %v237, 0
        %v310 = vsel %vm287, %v238, 0
        %v313 = vsel %vm287, %v239, 0
        %v316 = vsel %vm287, %v240, 0
        %v319 = vsel %vm287, %v241, 0
        %v322 = vsel %vm287, %v242, 0
        %v325 = vsel %vm287, %v243, 0
        %v328 = vsel %vm287, %v244, 0
        %v331 = vsel %vm287, %v245, 0
        %v334 = vsel %vm287, %v246, 0
        %v337 = vsel %vm287, %v247, 0
        %v340 = vsel %vm287, %v248, 0
        %342 = vmatpush.bf16.xpose.msra.mxu0 %v316
        %343 = vmatpush.bf16.xpose.msra.mxu0 %v313
        %344 = vmatpush.bf16.xpose.msra.mxu0 %v310
        %345 = vmatpush.bf16.xpose.msra.mxu0 %v307
        %346 = vmatpush.bf16.xpose.msra.mxu0 %v304
        %347 = vmatpush.bf16.xpose.msra.mxu0 %v301
        %348 = vmatpush.bf16.xpose.msra.mxu0 %v298
        %349 = vmatpush.bf16.xpose.msra.mxu0 %v295
        %350 = vmatmul.bf16.gmra.mxu0 %v289
        %v351 = vpop.f32.mrf.mxu0
        %v352 = vadd.f32 %v260, %v351
        %v353 = vpop.f32.mrf.mxu0
        %v354 = vadd.f32 %v265, %v353
        %355 = vmatmul.bf16.gmra.mxu0 %v292
        %v356 = vpop.f32.mrf.mxu0
        %v357 = vadd.f32 %v270, %v356
        %v358 = vpop.f32.mrf.mxu0
        %v359 = vadd.f32 %v275, %v358
        %360 = vdwg.mxu0
        %361 = vmatpush.bf16.xpose.msra.mxu0 %v340
        %362 = vmatpush.bf16.xpose.msra.mxu0 %v337
        %363 = vmatpush.bf16.xpose.msra.mxu0 %v334
        %364 = vmatpush.bf16.xpose.msra.mxu0 %v331
        %365 = vmatpush.bf16.xpose.msra.mxu0 %v328
        %366 = vmatpush.bf16.xpose.msra.mxu0 %v325
        %367 = vmatpush.bf16.xpose.msra.mxu0 %v322
        %368 = vmatpush.bf16.xpose.msra.mxu0 %v319
        %369 = vmatmul.bf16.gmra.mxu0 %v289
        %v370 = vpop.f32.mrf.mxu0
        %v371 = vadd.f32 %v260, %v370
        %v372 = vpop.f32.mrf.mxu0
        %v373 = vadd.f32 %v265, %v372
        %374 = vmatmul.bf16.gmra.mxu0 %v292
        %v375 = vpop.f32.mrf.mxu0
        %v376 = vadd.f32 %v270, %v375
        %v377 = vpop.f32.mrf.mxu0
        %v378 = vadd.f32 %v275, %v377
        %379 = vdwg.mxu0
        %v380 = vmax.f32 %v352, 0.0
        %v381 = vmax.f32 %v371, 0.0
        %v382 = vmax.f32 %v354, 0.0
        %v383 = vmax.f32 %v373, 0.0
        %v384 = vmax.f32 %v357, 0.0
        %v385 = vmax.f32 %v376, 0.0
        %v386 = vmax.f32 %v359, 0.0
        %v387 = vmax.f32 %v378, 0.0
        %s388 = scalar_lea.vmem %s1, 16
        %v389 = vld [vmem:[%s388] sm:$0xf]
        %v390 = vld [vmem:[%s388 + $0x4] sm:$0xf]
        %v391 = vld [vmem:[%s388 + $0x8] sm:$0xf]
        %v392 = vld [vmem:[%s388 + $0xc] sm:$0xf]
        %v393 = vpack.c.bf16 %v382, %v380
        %v394 = vpack.c.bf16 %v383, %v381
        %v395 = vpack.c.bf16 %v386, %v384
        %v396 = vpack.c.bf16 %v387, %v385
        %s397 = scalar_lea.vmem %s2, 32
        %v398 = vld [vmem:[%s397] sm:$0xff]
        %v399 = vld [vmem:[%s397 + $0x8] sm:$0xff]
        %v400 = vld [vmem:[%s397 + $0x10] sm:$0xff]
        %v401 = vld [vmem:[%s397 + $0x18] sm:$0xff]
        %403 = vset.pattern.permute.xlu0 0
        %404 = vperm.xlu0 %403, %v398
        %v405 = vpop.permute.xlu0 %404
        %408 = vset.pattern.permute.xlu0 0
        %409 = vperm.xlu0 %408, %v399
        %v410 = vpop.permute.xlu0 %409
        %413 = vset.pattern.permute.xlu0 0
        %414 = vperm.xlu0 %413, %v400
        %v415 = vpop.permute.xlu0 %414
        %418 = vset.pattern.permute.xlu0 0
        %419 = vperm.xlu0 %418, %v401
        %v420 = vpop.permute.xlu0 %419
        %v426 = vunpack.c.l.b16 %v389
        %v427 = vunpack.c.l.b16 %v390
        %v428 = vunpack.c.l.b16 %v391
        %v429 = vunpack.c.l.b16 %v392
        %v430 = vpack.c.b16 %v427, %v426
        %v431 = vpack.c.b16 %v429, %v428
        %v433 = vsel %vm287, %v430, 0
        %v436 = vsel %vm287, %v431, 0
        %438 = vmatpush.bf16.msra.mxu0 0
        %439 = vmatpush.bf16.msra.mxu0 0
        %440 = vmatpush.bf16.msra.mxu0 0
        %441 = vmatpush.bf16.msra.mxu0 0
        %442 = vmatpush.bf16.msra.mxu0 0
        %443 = vmatpush.bf16.msra.mxu0 0
        %444 = vmatpush.bf16.msra.mxu0 %v395
        %445 = vmatpush.bf16.msra.mxu0 %v393
        %446 = vmatmul.bf16.gmra.mxu0 %v433
        %v447 = vpop.f32.mrf.mxu0
        %v448 = vadd.f32 %v405, %v447
        %v449 = vpop.f32.mrf.mxu0
        %v450 = vadd.f32 %v410, %v449
        %451 = vmatmul.bf16.gmra.mxu0 %v436
        %v452 = vpop.f32.mrf.mxu0
        %v453 = vadd.f32 %v415, %v452
        %v454 = vpop.f32.mrf.mxu0
        %v455 = vadd.f32 %v420, %v454
        %456 = vdwg.mxu0
        %457 = vmatpush.bf16.msra.mxu0 0
        %458 = vmatpush.bf16.msra.mxu0 0
        %459 = vmatpush.bf16.msra.mxu0 0
        %460 = vmatpush.bf16.msra.mxu0 0
        %461 = vmatpush.bf16.msra.mxu0 0
        %462 = vmatpush.bf16.msra.mxu0 0
        %463 = vmatpush.bf16.msra.mxu0 %v396
        %464 = vmatpush.bf16.msra.mxu0 %v394
        %465 = vmatmul.bf16.gmra.mxu0 %v433
        %v466 = vpop.f32.mrf.mxu0
        %v467 = vadd.f32 %v405, %v466
        %v468 = vpop.f32.mrf.mxu0
        %v469 = vadd.f32 %v410, %v468
        %470 = vmatmul.bf16.gmra.mxu0 %v436
        %v471 = vpop.f32.mrf.mxu0
        %v472 = vadd.f32 %v415, %v471
        %v473 = vpop.f32.mrf.mxu0
        %v474 = vadd.f32 %v420, %v473
        %475 = vdwg.mxu0
        %v476 = vmax.f32 %v448, 0.0
        %v477 = vmax.f32 %v467, 0.0
        %v478 = vmax.f32 %v450, 0.0
        %v479 = vmax.f32 %v469, 0.0
        %v480 = vmax.f32 %v453, 0.0
        %v481 = vmax.f32 %v472, 0.0
        %v482 = vmax.f32 %v455, 0.0
        %v483 = vmax.f32 %v474, 0.0
        %484 = vxpose.xlu0.b32.start [1/16] %v201, 128
        %485 = vxpose.xlu0.b32.cont [2/16] %v202, 128
        %486 = vxpose.xlu0.b32.cont [3/16] %v203, 128
        %487 = vxpose.xlu0.b32.cont [4/16] %v204, 128
        %488 = vxpose.xlu0.b32.cont [5/16] %v205, 128
        %489 = vxpose.xlu0.b32.cont [6/16] %v206, 128
        %490 = vxpose.xlu0.b32.cont [7/16] %v207, 128
        %491 = vxpose.xlu0.b32.cont [8/16] %v208, 128
        %492 = vxpose.xlu0.b32.cont [9/16] %v209, 128
        %493 = vxpose.xlu0.b32.cont [10/16] %v210, 128
        %494 = vxpose.xlu0.b32.cont [11/16] %v211, 128
        %495 = vxpose.xlu0.b32.cont [12/16] %v212, 128
        %496 = vxpose.xlu0.b32.cont [13/16] %v213, 128
        %497 = vxpose.xlu0.b32.cont [14/16] %v214, 128
        %498 = vxpose.xlu0.b32.cont [15/16] %v215, 128
        %499 = vxpose.xlu0.b32.end [16/16] %v216, 128
        %v500 = vpop.trf.xlu0
        %v501 = vpop.trf.xlu0
        %v502 = vpop.trf.xlu0
        %v503 = vpop.trf.xlu0
        %v504 = vpop.trf.xlu0
        %v505 = vpop.trf.xlu0
        %v506 = vpop.trf.xlu0
        %v507 = vpop.trf.xlu0
        %v508 = vpop.trf.xlu0
        %v509 = vpop.trf.xlu0
        %v510 = vpop.trf.xlu0
        %v511 = vpop.trf.xlu0
        %v512 = vpop.trf.xlu0
        %v513 = vpop.trf.xlu0
        %v514 = vpop.trf.xlu0
        %v515 = vpop.trf.xlu0
        %516 = vxpose.xlu0.b32.start [1/16] %v217, 128
        %517 = vxpose.xlu0.b32.cont [2/16] %v218, 128
        %518 = vxpose.xlu0.b32.cont [3/16] %v219, 128
        %519 = vxpose.xlu0.b32.cont [4/16] %v220, 128
        %520 = vxpose.xlu0.b32.cont [5/16] %v221, 128
        %521 = vxpose.xlu0.b32.cont [6/16] %v222, 128
        %522 = vxpose.xlu0.b32.cont [7/16] %v223, 128
        %523 = vxpose.xlu0.b32.cont [8/16] %v224, 128
        %524 = vxpose.xlu0.b32.cont [9/16] %v225, 128
        %525 = vxpose.xlu0.b32.cont [10/16] %v226, 128
        %526 = vxpose.xlu0.b32.cont [11/16] %v227, 128
        %527 = vxpose.xlu0.b32.cont [12/16] %v228, 128
        %528 = vxpose.xlu0.b32.cont [13/16] %v229, 128
        %529 = vxpose.xlu0.b32.cont [14/16] %v230, 128
        %530 = vxpose.xlu0.b32.cont [15/16] %v231, 128
        %531 = vxpose.xlu0.b32.end [16/16] %v232, 128
        %v532 = vpop.trf.xlu0
        %v533 = vpop.trf.xlu0
        %v534 = vpop.trf.xlu0
        %v535 = vpop.trf.xlu0
        %v536 = vpop.trf.xlu0
        %v537 = vpop.trf.xlu0
        %v538 = vpop.trf.xlu0
        %v539 = vpop.trf.xlu0
        %v540 = vpop.trf.xlu0
        %v541 = vpop.trf.xlu0
        %v542 = vpop.trf.xlu0
        %v543 = vpop.trf.xlu0
        %v544 = vpop.trf.xlu0
        %v545 = vpop.trf.xlu0
        %v546 = vpop.trf.xlu0
        %v547 = vpop.trf.xlu0
        %v548 = vadd.f32 %v476, %v500
        %v549 = vadd.f32 %v477, %v532
        %v550 = vadd.f32 %v478, %v501
        %v551 = vadd.f32 %v479, %v533
        %v552 = vadd.f32 %v480, %v502
        %v553 = vadd.f32 %v481, %v534
        %v554 = vadd.f32 %v482, %v503
        %v555 = vadd.f32 %v483, %v535
        %556 = vst [vmem:[%s188] sm:$0xff] %v548
        %557 = vst [vmem:[%s188 + $0x8] sm:$0xff] %v549
        %558 = vst [vmem:[%s188 + $0x10] sm:$0xff] %v550
        %559 = vst [vmem:[%s188 + $0x18] sm:$0xff] %v551
        %560 = vst [vmem:[%s188 + $0x20] sm:$0xff] %v552
        %561 = vst [vmem:[%s188 + $0x28] sm:$0xff] %v553
        %562 = vst [vmem:[%s188 + $0x30] sm:$0xff] %v554
        %563 = vst [vmem:[%s188 + $0x38] sm:$0xff] %v555
        %s564 = sand.u32 %s109, 1
        %s565 = scalar_lea.sflag [#allocation3], %s564
        %s566 = sand.u32 %s109, 1
        %s567 = smul.addr %s566, 64
        %s568 = scalar_lea.vmem [#allocation2], %s567
        // Predicated region
        $region33: #{tpu_custom_call.1} parent=31 // pred_check
          %p569 = pneg %p119
        $region34: #{tpu_custom_call.1} parent=31 // pred_check_branch
          %571 = sbr.rel (%p569) target = $region36
        $region35: #{tpu_custom_call.1} parent=31 // pred_region
          %s572 = smul.u32 2, %s22
          %574 = vsyncadd %s565, 0
          %s575 = smul.addr %s21, 8
          %s576 = sadd.s32 %s572, %s575
          %s577 = smul.addr %s576, 8
          %s578 = scalar_lea.hbm %s3, %s577
          %s579 = sshll.u32 %s568, 4
          %s580 = int_to_ptr.vmem [resolvable:$true] %s579
          %s581 = sshll.u32 %s578, 4
          %s582 = int_to_ptr.hbm [resolvable:$true] %s581
          %587 = dma.vmem_to_hbm [thread:$0]  %s580, 1024, %s582, %s565, 256, 256, 16
        $region36: #{tpu_custom_call.1} parent=31 // pred_fallthru
          _
      $region32: #{tpu_custom_call.1} parent=5 // pred_fallthru
        _
      %p588 = scmp.le.s32.totalorder 2, %s12
      // Predicated region
      $region37: #{tpu_custom_call.1} parent=5 // pred_check
        %p589 = pneg %p588
      $region38: #{tpu_custom_call.1} parent=5 // pred_check_branch
        %591 = sbr.rel (%p589) target = $region40
      $region39: #{tpu_custom_call.1} parent=5 // pred_region
        %s592 = ssub.s32 %s12, 2
        // Predicated region
        $region41: #{tpu_custom_call.1} parent=39 // pred_check
          %p593 = pneg %p125
        $region42: #{tpu_custom_call.1} parent=39 // pred_check_branch
          %595 = sbr.rel (%p593) target = $region44
        $region43: #{tpu_custom_call.1} parent=39 // pred_region
          %s596 = sand.u32 %s110, 1
          %s597 = scalar_lea.sflag [#allocation3], %s596
          %s598 = sand.u32 %s110, 1
          %s599 = smul.addr %s598, 64
          %s600 = scalar_lea.vmem [#allocation2], %s599
          %602 = dma.done %s597, 1024
        $region44: #{tpu_custom_call.1} parent=39 // pred_fallthru
          _
      $region40: #{tpu_custom_call.1} parent=5 // pred_fallthru
        _
    $region6: #{tpu_custom_call.1} parent=1 // loop_footer
      %s16 = sadd.s32 1, %s12
    $region7: #{tpu_custom_call.1} parent=1 // loop_footer_branch
      %11 = sbr.rel target = $region3
    $region8: #{tpu_custom_call.1} parent=1 // loop_exit
      _
    %603 = vsyncpa [#allocation3], 1
    %s604 = scalar_lea.sflag [#allocation3], 1
    %605 = vsyncpa %s604, 1

</llo_original>
